<compile_context>
chip_gen: v5e
topology: v5e:2x2
jax: 0.10.0
libtpu: 0.0.40
codegen_flags: <defaults>
</compile_context>

<pallas_src>
import functools

import jax
import jax.numpy as jnp
from jax.experimental import pallas as pl
from jax.experimental.pallas import tpu as pltpu

LANE = 128  # base lane width


def _round_up(x, m):
    return (x + m - 1) // m * m


def _vmem_capacity_bytes():
    try:
        return int(pltpu.get_tpu_info().vmem_capacity_bytes)
    except Exception:
        return 64 << 20  # conservative default (v7x per-TC)


def _lane_multiple():
    """256-lane padding on v6e/v7x (2x 256x256 MXU); 128 otherwise."""
    try:
        kind = jax.devices()[0].device_kind.lower()
    except Exception:
        return LANE
    if any(tag in kind for tag in ("v6", "v7", "tpu7", "7x")):
        return 256
    return LANE


def _pad_dim(d, lane_mult):
    # Only use the wider multiple when the dim is big enough for it to pay off.
    mult = lane_mult if (lane_mult > LANE and d > LANE) else LANE
    return _round_up(d, mult)


def _pad_params(params, lane_mult):
    """Zero-pad weights (K,N)->(Kp,Np) and biases (1,N)->(1,Np) to lane-dense shapes.

    Zero padding is exact: padded input lanes are 0, padded weight rows/cols are 0 and padded
    bias lanes are 0, so padded output lanes stay 0 through ReLU and contribute nothing later.
    """
    padded = []
    for (w, b) in params:
        K, N = w.shape
        Kp, Np = _pad_dim(K, lane_mult), _pad_dim(N, lane_mult)
        wp = jnp.zeros((Kp, Np), w.dtype).at[:K, :N].set(w)
        bp = jnp.zeros((1, Np), b.dtype).at[:, :N].set(b)
        padded.append((wp, bp))
    return padded


# --------------------------------------------------------------------------------------
# Fused path: one pallas_call, weights resident in VMEM, activations never leave VMEM.
# --------------------------------------------------------------------------------------
def _mlp_fused_kernel(*refs, num_layers):
    """refs = (x_ref, w_0..w_{L-1}, b_0..b_{L-1}, o_ref)."""
    x_ref = refs[0]
    w_refs = refs[1:1 + num_layers]
    b_refs = refs[1 + num_layers:1 + 2 * num_layers]
    o_ref = refs[1 + 2 * num_layers]

    act = x_ref[...]
    for l in range(num_layers):
        y = jnp.dot(act, w_refs[l][...], preferred_element_type=jnp.float32)
        y = y + b_refs[l][...].astype(jnp.float32)  # (1, Np) broadcasts over rows
        if l < num_layers - 1:
            y = jnp.maximum(y, 0.0)
            act = y.astype(x_ref.dtype)             # MXU inputs stay in storage dtype
        else:
            o_ref[...] = y.astype(o_ref.dtype)


def _resident_spec(shape, single_buffer):
    # Constant index_map -> the block never changes; single-buffering halves its VMEM cost.
    if single_buffer:
        return pl.BlockSpec(shape, lambda i: (0, 0), pipeline_mode=pl.Buffered(1))
    return pl.BlockSpec(shape, lambda i: (0, 0))


def _pick_tile_m(Mp, requested, need_fn, budget):
    candidates = [t for t in range(LANE, Mp + 1, LANE) if Mp % t == 0]
    capped = [t for t in candidates if t <= requested] or [candidates[0]]
    fitting = [t for t in capped if need_fn(t) <= budget]
    if not fitting:
        return None
    tile = max(fitting)
    if Mp // tile < 2:
        # Prefer >=2 grid steps so ("parallel",) shards rows across v7x's 2 TensorCores.
        multi = [t for t in fitting if Mp // t >= 2]
        if multi:
            tile = max(multi)
    return tile


# --------------------------------------------------------------------------------------
# Fallback path: per-layer M/N/K-tiled matmul + bias (+ ReLU) when weights don't fit VMEM.
# --------------------------------------------------------------------------------------
def _linear_tiled_kernel(x_ref, w_ref, b_ref, o_ref, acc_ref, *, apply_relu):
    k = pl.program_id(2)

    @pl.when(k == 0)
    def _():
        acc_ref[...] = jnp.zeros_like(acc_ref)

    acc_ref[...] += jnp.dot(x_ref[...], w_ref[...], preferred_element_type=jnp.float32)

    @pl.when(k == pl.num_programs(2) - 1)
    def _():
        y = acc_ref[...] + b_ref[...].astype(jnp.float32)
        if apply_relu:
            y = jnp.maximum(y, 0.0)
        o_ref[...] = y.astype(o_ref.dtype)


def _largest_divisor_tile(dim, cap):
    best = LANE
    for t in range(LANE, min(dim, cap) + 1, LANE):
        if dim % t == 0:
            best = t
    return best


def _linear_tiled(xp, w, b, *, apply_relu, out_dtype, budget,
                  tile_m=256, tile_n=512, tile_k=512):
    Mp, Kp = xp.shape
    _, Np = w.shape
    tm = _largest_divisor_tile(Mp, tile_m)
    tn = _largest_divisor_tile(Np, tile_n)
    tk = _largest_divisor_tile(Kp, tile_k)

    o_isz = jnp.dtype(out_dtype).itemsize
    vmem_need = (2 * (tm * tk * xp.dtype.itemsize + tk * tn * w.dtype.itemsize
                      + tn * b.dtype.itemsize + tm * tn * o_isz)
                 + tm * tn * 4)
    vmem_limit = int(min(budget, max(vmem_need + (4 << 20), 32 << 20)))

    kernel = functools.partial(_linear_tiled_kernel, apply_relu=apply_relu)
    return pl.pallas_call(
        kernel,
        out_shape=jax.ShapeDtypeStruct((Mp, Np), out_dtype),
        grid_spec=pltpu.PrefetchScalarGridSpec(
            num_scalar_prefetch=0,
            grid=(Mp // tm, Np // tn, Kp // tk),
            in_specs=[
                pl.BlockSpec((tm, tk), lambda i, j, k: (i, k)),
                pl.BlockSpec((tk, tn), lambda i, j, k: (k, j)),
                pl.BlockSpec((1, tn), lambda i, j, k: (0, j)),
            ],
            out_specs=pl.BlockSpec((tm, tn), lambda i, j, k: (i, j)),
            scratch_shapes=[pltpu.VMEM((tm, tn), jnp.float32)],
        ),
        compiler_params=pltpu.CompilerParams(
            dimension_semantics=("parallel", "parallel", "arbitrary"),
            vmem_limit_bytes=vmem_limit,
        ),
    )(xp, w, b)


# --------------------------------------------------------------------------------------
# Public entry point (matches MLP.forward semantics).
# --------------------------------------------------------------------------------------
def mlp_forward(x, params, *, tile_m=None, single_buffer_weights=True,
                force_layerwise=False):
    """x: (..., input_dim); params: list of (W[in,out], b[1,out])."""
    lead_shape = x.shape[:-1]
    in_dim = x.shape[-1]
    out_dim = params[-1][0].shape[1]

    xf = x.reshape(-1, in_dim)
    M = xf.shape[0]

    lane_mult = _lane_multiple()
    padded = _pad_params(params, lane_mult)
    L = len(padded)
    ws = [w for (w, _) in padded]
    bs = [b for (_, b) in padded]
    Kp0 = ws[0].shape[0]
    Np_last = ws[-1].shape[1]

    Mp = _round_up(max(M, 1), LANE)
    xp = jnp.zeros((Mp, Kp0), xf.dtype).at[:M, :in_dim].set(xf)

    vmem_cap = _vmem_capacity_bytes()
    budget = vmem_cap - (8 << 20)  # generation-aware cap with headroom (per-TC on v7x)

    if tile_m is None:
        tile_m = 256 if vmem_cap <= (64 << 20) else 512  # v7x vs v5e/v6e defaults

    x_isz = xp.dtype.itemsize
    o_isz = x_isz
    w_bytes = sum(int(w.size) * w.dtype.itemsize for w in ws)
    b_bytes = sum(int(b.size) * b.dtype.itemsize for b in bs)
    max_np = max(w.shape[1] for w in ws)

    def fused_need(tm):
        wfac = 1 if single_buffer_weights else 2           # Buffered(1) weights counted once
        io = 2 * tm * (Kp0 * x_isz + Np_last * o_isz)      # double-buffered x / out row tiles
        act = tm * max_np * (4 + x_isz)                    # live f32 y + storage-dtype act
        return wfac * (w_bytes + b_bytes) + io + act

    tm = None if force_layerwise else _pick_tile_m(Mp, tile_m, fused_need, budget)

    if tm is None:
        # Weights don't fit resident in VMEM (or layer-wise path forced): run each layer as an
        # M/N/K-tiled matmul kernel; activations round-trip HBM between layers.
        act = xp
        for l, (w, b) in enumerate(padded):
            act = _linear_tiled(act, w, b, apply_relu=(l < L - 1),
                                out_dtype=x.dtype, budget=budget)
        return act[:M, :out_dim].reshape(*lead_shape, out_dim)

    # --- fused, weight-resident path ---
    in_specs = [pl.BlockSpec((tm, Kp0), lambda i: (i, 0))]          # row tile of x
    for w in ws:
        in_specs.append(_resident_spec(w.shape, single_buffer_weights))
    for b in bs:
        in_specs.append(_resident_spec(b.shape, single_buffer_weights))
    out_specs = pl.BlockSpec((tm, Np_last), lambda i: (i, 0))

    need = fused_need(tm)
    vmem_limit = int(min(budget, max(need + (4 << 20), 32 << 20)))

    flops = 2 * Mp * sum(w.shape[0] * w.shape[1] for w in ws)
    bytes_accessed = int(xp.size) * x_isz + w_bytes + b_bytes + Mp * Np_last * o_isz
    cost = pl.CostEstimate(flops=flops, transcendentals=0, bytes_accessed=bytes_accessed)

    kernel = functools.partial(_mlp_fused_kernel, num_layers=L)
    out_padded = pl.pallas_call(
        kernel,
        out_shape=jax.ShapeDtypeStruct((Mp, Np_last), x.dtype),
        grid_spec=pltpu.PrefetchScalarGridSpec(
            num_scalar_prefetch=0,
            grid=(Mp // tm,),
            in_specs=in_specs,
            out_specs=out_specs,
        ),
        compiler_params=pltpu.CompilerParams(
            dimension_semantics=("parallel",),   # row tiles are independent -> v7x 2-TC sharding
            vmem_limit_bytes=vmem_limit,
        ),
        cost_estimate=cost,
    )(xp, *ws, *bs)

    return out_padded[:M, :out_dim].reshape(*lead_shape, out_dim)


def init_mlp_params(key, input_dim, hidden_dim, output_dim, num_layers,
                    dtype=jnp.bfloat16):
    """nn.Linear-style init (uniform +-1/sqrt(fan_in)); weights stored as (in, out).

    bf16 is the default storage dtype (f32 matmuls are emulated on the MXU); pass
    dtype=jnp.float32 when bit-matching a PyTorch f32 reference is required.
    """
    h = [hidden_dim] * (num_layers - 1)
    dims_in = [input_dim] + h
    dims_out = h + [output_dim]
    params = []
    for n, k in zip(dims_in, dims_out):
        key, kw, kb = jax.random.split(key, 3)
        bound = 1.0 / (n ** 0.5)
        w = jax.random.uniform(kw, (n, k), jnp.float32, minval=-bound, maxval=bound)
        b = jax.random.uniform(kb, (1, k), jnp.float32, minval=-bound, maxval=bound)
        params.append((w.astype(dtype), b.astype(dtype)))
    return params


if __name__ == "__main__":
    input_dim, hidden_dim, output_dim, num_layers = 16, 32, 8, 3

    key = jax.random.PRNGKey(0)
    key, kx1, kx2 = jax.random.split(key, 3)
    x_small = jax.random.normal(kx1, (2, 8, input_dim), dtype=jnp.float32)    # 16 rows
    x_big = jax.random.normal(kx2, (4, 128, input_dim), dtype=jnp.float32)    # 512 rows -> 2-step grid

    def reference(x, params):
        act = x.reshape(-1, x.shape[-1]).astype(jnp.float32)
        for i, (w, b) in enumerate(params):
            act = act @ w.astype(jnp.float32) + b.astype(jnp.float32)
            if i < len(params) - 1:
                act = jnp.maximum(act, 0.0)
        return act.reshape(*x.shape[:-1], params[-1][0].shape[1])

    def run_checks(sbw):
        fwd = jax.jit(lambda xx, pp: mlp_forward(xx, pp, single_buffer_weights=sbw))
        fwd_lw = jax.jit(lambda xx, pp: mlp_forward(xx, pp, single_buffer_weights=sbw,
                                                    force_layerwise=True))

        # 1) f32 params/activations: bit-faithful to the PyTorch-style reference.
        params_f32 = init_mlp_params(key, input_dim, hidden_dim, output_dim, num_layers,
                                     dtype=jnp.float32)
        out = fwd(x_small, params_f32)
        jax.block_until_ready(out)
        ref = reference(x_small, params_f32)
        assert out.shape == (2, 8, output_dim)
        assert jnp.allclose(out, ref, atol=1e-5), "f32 fused mismatch"

        # 2) bf16 storage (default), larger row count -> multi-step parallel row grid.
        #    Intermediate activations are truncated to bf16, so tolerance is loose vs f32 ref.
        params_bf16 = init_mlp_params(key, input_dim, hidden_dim, output_dim, num_layers,
                                      dtype=jnp.bfloat16)
        out_b = fwd(x_big.astype(jnp.bfloat16), params_bf16)
        jax.block_until_ready(out_b)
        ref_b = reference(x_big, params_bf16)
        assert out_b.shape == (4, 128, output_dim)
        assert jnp.allclose(out_b.astype(jnp.float32), ref_b, atol=0.1, rtol=0.1), \
            "bf16 fused mismatch"

        # 3) Layer-wise N/K-tiled fallback path (used when weights exceed the VMEM budget).
        out_lw = fwd_lw(x_small, params_f32)
        jax.block_until_ready(out_lw)
        assert jnp.allclose(out_lw, ref, atol=1e-5), "layer-wise fallback mismatch"

    try:
        run_checks(sbw=True)
    except Exception:
        # Single-buffered resident weights (pl.Buffered(1)) are a pure VMEM optimization;
        # if unsupported by this runtime, re-run with default double-buffering.
        run_checks(sbw=False)

    print("KERNEL_OK")
</pallas_src>

<mosaic_0001>
module attributes {stable_mosaic.version = 11 : i64} {
  func.func @_mlp_fused_kernel(%arg0: i32, %arg1: memref<128x128xf32, #tpu.memory_space<vmem>>, %arg2: memref<128x128xf32, #tpu.memory_space<vmem>>, %arg3: memref<128x128xf32, #tpu.memory_space<vmem>>, %arg4: memref<128x128xf32, #tpu.memory_space<vmem>>, %arg5: memref<1x128xf32, #tpu.memory_space<vmem>>, %arg6: memref<1x128xf32, #tpu.memory_space<vmem>>, %arg7: memref<1x128xf32, #tpu.memory_space<vmem>>, %arg8: memref<128x128xf32, #tpu.memory_space<vmem>>) attributes {dimension_semantics = [#tpu.dimension_semantics<parallel>], iteration_bounds = array<i64: 1>, scalar_prefetch = 0 : i64, scratch_operands = 0 : i64, tpu.core_type = #tpu.core_type<tc>, window_params = [{transform_indices = @transform_0, window_bounds = array<i64: 128, 128>}, {pipeline_mode = #tpu.pipeline_mode<synchronous>, transform_indices = @transform_1, window_bounds = array<i64: 128, 128>}, {pipeline_mode = #tpu.pipeline_mode<synchronous>, transform_indices = @transform_2, window_bounds = array<i64: 128, 128>}, {pipeline_mode = #tpu.pipeline_mode<synchronous>, transform_indices = @transform_3, window_bounds = array<i64: 128, 128>}, {pipeline_mode = #tpu.pipeline_mode<synchronous>, transform_indices = @transform_4, window_bounds = array<i64: 1, 128>}, {pipeline_mode = #tpu.pipeline_mode<synchronous>, transform_indices = @transform_5, window_bounds = array<i64: 1, 128>}, {pipeline_mode = #tpu.pipeline_mode<synchronous>, transform_indices = @transform_6, window_bounds = array<i64: 1, 128>}, {transform_indices = @transform_7, window_bounds = array<i64: 128, 128>}]} {
    %c0 = arith.constant 0 : index
    %c0_0 = arith.constant 0 : index
    %0 = vector.load %arg1[%c0, %c0_0] : memref<128x128xf32, #tpu.memory_space<vmem>>, vector<128x128xf32>
    %c0_1 = arith.constant 0 : index
    %c0_2 = arith.constant 0 : index
    %1 = vector.load %arg2[%c0_1, %c0_2] : memref<128x128xf32, #tpu.memory_space<vmem>>, vector<128x128xf32>
    %cst = arith.constant dense<0.000000e+00> : vector<128x128xf32>
    %2 = tpu.matmul %0, %1, %cst {dimension_numbers = #tpu.dot_dimension_numbers<[1], [0], [0], [1], [0, 0, 1, 1], [], []>} : vector<128x128xf32>, vector<128x128xf32>, vector<128x128xf32> -> vector<128x128xf32>
    %c0_3 = arith.constant 0 : index
    %c0_4 = arith.constant 0 : index
    %3 = vector.load %arg5[%c0_3, %c0_4] : memref<1x128xf32, #tpu.memory_space<vmem>>, vector<1x128xf32>
    %4 = vector.broadcast %3 : vector<1x128xf32> to vector<128x128xf32>
    %5 = arith.addf %2, %4 : vector<128x128xf32>
    %cst_5 = arith.constant 0.000000e+00 : f32
    %6 = vector.broadcast %cst_5 : f32 to vector<128x128xf32>
    %7 = arith.maximumf %5, %6 : vector<128x128xf32>
    %c0_6 = arith.constant 0 : index
    %c0_7 = arith.constant 0 : index
    %8 = vector.load %arg3[%c0_6, %c0_7] : memref<128x128xf32, #tpu.memory_space<vmem>>, vector<128x128xf32>
    %cst_8 = arith.constant dense<0.000000e+00> : vector<128x128xf32>
    %9 = tpu.matmul %7, %8, %cst_8 {dimension_numbers = #tpu.dot_dimension_numbers<[1], [0], [0], [1], [0, 0, 1, 1], [], []>} : vector<128x128xf32>, vector<128x128xf32>, vector<128x128xf32> -> vector<128x128xf32>
    %c0_9 = arith.constant 0 : index
    %c0_10 = arith.constant 0 : index
    %10 = vector.load %arg6[%c0_9, %c0_10] : memref<1x128xf32, #tpu.memory_space<vmem>>, vector<1x128xf32>
    %11 = vector.broadcast %10 : vector<1x128xf32> to vector<128x128xf32>
    %12 = arith.addf %9, %11 : vector<128x128xf32>
    %cst_11 = arith.constant 0.000000e+00 : f32
    %13 = vector.broadcast %cst_11 : f32 to vector<128x128xf32>
    %14 = arith.maximumf %12, %13 : vector<128x128xf32>
    %c0_12 = arith.constant 0 : index
    %c0_13 = arith.constant 0 : index
    %15 = vector.load %arg4[%c0_12, %c0_13] : memref<128x128xf32, #tpu.memory_space<vmem>>, vector<128x128xf32>
    %cst_14 = arith.constant dense<0.000000e+00> : vector<128x128xf32>
    %16 = tpu.matmul %14, %15, %cst_14 {dimension_numbers = #tpu.dot_dimension_numbers<[1], [0], [0], [1], [0, 0, 1, 1], [], []>} : vector<128x128xf32>, vector<128x128xf32>, vector<128x128xf32> -> vector<128x128xf32>
    %c0_15 = arith.constant 0 : index
    %c0_16 = arith.constant 0 : index
    %17 = vector.load %arg7[%c0_15, %c0_16] : memref<1x128xf32, #tpu.memory_space<vmem>>, vector<1x128xf32>
    %18 = vector.broadcast %17 : vector<1x128xf32> to vector<128x128xf32>
    %19 = arith.addf %16, %18 : vector<128x128xf32>
    %c0_17 = arith.constant 0 : index
    %c0_18 = arith.constant 0 : index
    %20 = vector.load %arg8[%c0_17, %c0_18] : memref<128x128xf32, #tpu.memory_space<vmem>>, vector<128x128xf32>
    tpu.vector_store %arg8[%c0_17, %c0_18], %19 {strides = array<i32>} : memref<128x128xf32, #tpu.memory_space<vmem>>, vector<128x128xf32>,
    return
  }
  func.func @transform_0(%arg0: i32) -> (i32, i32) {
    %c0_i32 = arith.constant 0 : i32
    %c0_i32_0 = arith.constant 0 : i32
    return %arg0, %c0_i32 : i32, i32
  }
  func.func @transform_1(%arg0: i32) -> (i32, i32) {
    %c0_i32 = arith.constant 0 : i32
    %c0_i32_0 = arith.constant 0 : i32
    %c0_i32_1 = arith.constant 0 : i32
    return %c0_i32, %c0_i32_0 : i32, i32
  }
  func.func @transform_2(%arg0: i32) -> (i32, i32) {
    %c0_i32 = arith.constant 0 : i32
    %c0_i32_0 = arith.constant 0 : i32
    %c0_i32_1 = arith.constant 0 : i32
    return %c0_i32, %c0_i32_0 : i32, i32
  }
  func.func @transform_3(%arg0: i32) -> (i32, i32) {
    %c0_i32 = arith.constant 0 : i32
    %c0_i32_0 = arith.constant 0 : i32
    %c0_i32_1 = arith.constant 0 : i32
    return %c0_i32, %c0_i32_0 : i32, i32
  }
  func.func @transform_4(%arg0: i32) -> (i32, i32) {
    %c0_i32 = arith.constant 0 : i32
    %c0_i32_0 = arith.constant 0 : i32
    %c0_i32_1 = arith.constant 0 : i32
    return %c0_i32, %c0_i32_0 : i32, i32
  }
  func.func @transform_5(%arg0: i32) -> (i32, i32) {
    %c0_i32 = arith.constant 0 : i32
    %c0_i32_0 = arith.constant 0 : i32
    %c0_i32_1 = arith.constant 0 : i32
    return %c0_i32, %c0_i32_0 : i32, i32
  }
  func.func @transform_6(%arg0: i32) -> (i32, i32) {
    %c0_i32 = arith.constant 0 : i32
    %c0_i32_0 = arith.constant 0 : i32
    %c0_i32_1 = arith.constant 0 : i32
    return %c0_i32, %c0_i32_0 : i32, i32
  }
  func.func @transform_7(%arg0: i32) -> (i32, i32) {
    %c0_i32 = arith.constant 0 : i32
    %c0_i32_0 = arith.constant 0 : i32
    return %arg0, %c0_i32 : i32, i32
  }
}

module attributes {stable_mosaic.version = 11 : i64} {
  func.func @_mlp_fused_kernel(%arg0: i32, %arg1: memref<128x128xf32, #tpu.memory_space<vmem>>, %arg2: memref<128x128xf32, #tpu.memory_space<vmem>>, %arg3: memref<128x128xf32, #tpu.memory_space<vmem>>, %arg4: memref<128x128xf32, #tpu.memory_space<vmem>>, %arg5: memref<1x128xf32, #tpu.memory_space<vmem>>, %arg6: memref<1x128xf32, #tpu.memory_space<vmem>>, %arg7: memref<1x128xf32, #tpu.memory_space<vmem>>, %arg8: memref<128x128xf32, #tpu.memory_space<vmem>>) attributes {dimension_semantics = [#tpu.dimension_semantics<parallel>], iteration_bounds = array<i64: 1>, scalar_prefetch = 0 : i64, scratch_operands = 0 : i64, tpu.core_type = #tpu.core_type<tc>, window_params = [{transform_indices = @transform_0, window_bounds = array<i64: 128, 128>}, {pipeline_mode = #tpu.pipeline_mode<synchronous>, transform_indices = @transform_1, window_bounds = array<i64: 128, 128>}, {pipeline_mode = #tpu.pipeline_mode<synchronous>, transform_indices = @transform_2, window_bounds = array<i64: 128, 128>}, {pipeline_mode = #tpu.pipeline_mode<synchronous>, transform_indices = @transform_3, window_bounds = array<i64: 128, 128>}, {pipeline_mode = #tpu.pipeline_mode<synchronous>, transform_indices = @transform_4, window_bounds = array<i64: 1, 128>}, {pipeline_mode = #tpu.pipeline_mode<synchronous>, transform_indices = @transform_5, window_bounds = array<i64: 1, 128>}, {pipeline_mode = #tpu.pipeline_mode<synchronous>, transform_indices = @transform_6, window_bounds = array<i64: 1, 128>}, {transform_indices = @transform_7, window_bounds = array<i64: 128, 128>}]} {
    %c0 = arith.constant 0 : index
    %c0_0 = arith.constant 0 : index
    %0 = vector.load %arg1[%c0, %c0_0] : memref<128x128xf32, #tpu.memory_space<vmem>>, vector<128x128xf32>
    %c0_1 = arith.constant 0 : index
    %c0_2 = arith.constant 0 : index
    %1 = vector.load %arg2[%c0_1, %c0_2] : memref<128x128xf32, #tpu.memory_space<vmem>>, vector<128x128xf32>
    %cst = arith.constant dense<0.000000e+00> : vector<128x128xf32>
    %2 = tpu.matmul %0, %1, %cst {dimension_numbers = #tpu.dot_dimension_numbers<[1], [0], [0], [1], [0, 0, 1, 1], [], []>} : vector<128x128xf32>, vector<128x128xf32>, vector<128x128xf32> -> vector<128x128xf32>
    %c0_3 = arith.constant 0 : index
    %c0_4 = arith.constant 0 : index
    %3 = vector.load %arg5[%c0_3, %c0_4] : memref<1x128xf32, #tpu.memory_space<vmem>>, vector<1x128xf32>
    %4 = vector.broadcast %3 : vector<1x128xf32> to vector<128x128xf32>
    %5 = arith.addf %2, %4 : vector<128x128xf32>
    %cst_5 = arith.constant 0.000000e+00 : f32
    %6 = vector.broadcast %cst_5 : f32 to vector<128x128xf32>
    %7 = arith.maximumf %5, %6 : vector<128x128xf32>
    %c0_6 = arith.constant 0 : index
    %c0_7 = arith.constant 0 : index
    %8 = vector.load %arg3[%c0_6, %c0_7] : memref<128x128xf32, #tpu.memory_space<vmem>>, vector<128x128xf32>
    %cst_8 = arith.constant dense<0.000000e+00> : vector<128x128xf32>
    %9 = tpu.matmul %7, %8, %cst_8 {dimension_numbers = #tpu.dot_dimension_numbers<[1], [0], [0], [1], [0, 0, 1, 1], [], []>} : vector<128x128xf32>, vector<128x128xf32>, vector<128x128xf32> -> vector<128x128xf32>
    %c0_9 = arith.constant 0 : index
    %c0_10 = arith.constant 0 : index
    %10 = vector.load %arg6[%c0_9, %c0_10] : memref<1x128xf32, #tpu.memory_space<vmem>>, vector<1x128xf32>
    %11 = vector.broadcast %10 : vector<1x128xf32> to vector<128x128xf32>
    %12 = arith.addf %9, %11 : vector<128x128xf32>
    %cst_11 = arith.constant 0.000000e+00 : f32
    %13 = vector.broadcast %cst_11 : f32 to vector<128x128xf32>
    %14 = arith.maximumf %12, %13 : vector<128x128xf32>
    %c0_12 = arith.constant 0 : index
    %c0_13 = arith.constant 0 : index
    %15 = vector.load %arg4[%c0_12, %c0_13] : memref<128x128xf32, #tpu.memory_space<vmem>>, vector<128x128xf32>
    %cst_14 = arith.constant dense<0.000000e+00> : vector<128x128xf32>
    %16 = tpu.matmul %14, %15, %cst_14 {dimension_numbers = #tpu.dot_dimension_numbers<[1], [0], [0], [1], [0, 0, 1, 1], [], []>} : vector<128x128xf32>, vector<128x128xf32>, vector<128x128xf32> -> vector<128x128xf32>
    %c0_15 = arith.constant 0 : index
    %c0_16 = arith.constant 0 : index
    %17 = vector.load %arg7[%c0_15, %c0_16] : memref<1x128xf32, #tpu.memory_space<vmem>>, vector<1x128xf32>
    %18 = vector.broadcast %17 : vector<1x128xf32> to vector<128x128xf32>
    %19 = arith.addf %16, %18 : vector<128x128xf32>
    %c0_17 = arith.constant 0 : index
    %c0_18 = arith.constant 0 : index
    %20 = vector.load %arg8[%c0_17, %c0_18] : memref<128x128xf32, #tpu.memory_space<vmem>>, vector<128x128xf32>
    tpu.vector_store %arg8[%c0_17, %c0_18], %19 {strides = array<i32>} : memref<128x128xf32, #tpu.memory_space<vmem>>, vector<128x128xf32>,
    return
  }
  func.func @transform_0(%arg0: i32) -> (i32, i32) {
    %c0_i32 = arith.constant 0 : i32
    %c0_i32_0 = arith.constant 0 : i32
    return %arg0, %c0_i32 : i32, i32
  }
  func.func @transform_1(%arg0: i32) -> (i32, i32) {
    %c0_i32 = arith.constant 0 : i32
    %c0_i32_0 = arith.constant 0 : i32
    %c0_i32_1 = arith.constant 0 : i32
    return %c0_i32, %c0_i32_0 : i32, i32
  }
  func.func @transform_2(%arg0: i32) -> (i32, i32) {
    %c0_i32 = arith.constant 0 : i32
    %c0_i32_0 = arith.constant 0 : i32
    %c0_i32_1 = arith.constant 0 : i32
    return %c0_i32, %c0_i32_0 : i32, i32
  }
  func.func @transform_3(%arg0: i32) -> (i32, i32) {
    %c0_i32 = arith.constant 0 : i32
    %c0_i32_0 = arith.constant 0 : i32
    %c0_i32_1 = arith.constant 0 : i32
    return %c0_i32, %c0_i32_0 : i32, i32
  }
  func.func @transform_4(%arg0: i32) -> (i32, i32) {
    %c0_i32 = arith.constant 0 : i32
    %c0_i32_0 = arith.constant 0 : i32
    %c0_i32_1 = arith.constant 0 : i32
    return %c0_i32, %c0_i32_0 : i32, i32
  }
  func.func @transform_5(%arg0: i32) -> (i32, i32) {
    %c0_i32 = arith.constant 0 : i32
    %c0_i32_0 = arith.constant 0 : i32
    %c0_i32_1 = arith.constant 0 : i32
    return %c0_i32, %c0_i32_0 : i32, i32
  }
  func.func @transform_6(%arg0: i32) -> (i32, i32) {
    %c0_i32 = arith.constant 0 : i32
    %c0_i32_0 = arith.constant 0 : i32
    %c0_i32_1 = arith.constant 0 : i32
    return %c0_i32, %c0_i32_0 : i32, i32
  }
  func.func @transform_7(%arg0: i32) -> (i32, i32) {
    %c0_i32 = arith.constant 0 : i32
    %c0_i32_0 = arith.constant 0 : i32
    return %arg0, %c0_i32 : i32, i32
  }
}

</mosaic_0001>

<llo_original>
// kernel: _lambda_.1
$region0: #{_lambda_.1}
  #allocation0 [shape = 'u32[]', space=smem, size = 0x4, offset = 0x4, fixed_abs, tag = 'smem constant byte address 0x4 - core index']
  #allocation1 [shape = 'u32[72,128]{1,0:T(1,128)}', space=vmem, size = 0x9000, scoped, tag = 'internal scratch']
  %s0 = inlined_call_operand.vmem [shape: f32[128,128], index: 0, kind: input, shape index: {}]
  %s1 = inlined_call_operand.vmem [shape: f32[128,128], index: 1, kind: input, shape index: {}]
  %s2 = inlined_call_operand.vmem [shape: f32[128,128], index: 2, kind: input, shape index: {}]
  %s3 = inlined_call_operand.vmem [shape: f32[128,128], index: 3, kind: input, shape index: {}]
  %s4 = inlined_call_operand.vmem [shape: f32[1,128], index: 4, kind: input, shape index: {}]
  %s5 = inlined_call_operand.vmem [shape: f32[1,128], index: 5, kind: input, shape index: {}]
  %s6 = inlined_call_operand.vmem [shape: f32[1,128], index: 6, kind: input, shape index: {}]
  %s7 = inlined_call_operand.vmem [shape: f32[128,128], index: 7, kind: output, shape index: {}]
  %s8 = sld [smem:[#allocation0]]
  $region38: #{_lambda_.1} parent=0
    _
  %s10 = ssub.s32 1, %s8
  %s11 = scalar_select 0, %s10, %s8
  // Predicated region
  $region2: #{_lambda_.1} parent=0 // pred_check
    _
  $region3: #{_lambda_.1} parent=0 // pred_check_branch
    %13 = sbr.rel (0) target = $region5
  $region4: #{_lambda_.1} parent=0 // pred_region
    _
  $region5: #{_lambda_.1} parent=0 // pred_fallthru
    _
  // Predicated region
  $region6: #{_lambda_.1} parent=0 // pred_check
    _
  $region7: #{_lambda_.1} parent=0 // pred_check_branch
    %15 = sbr.rel (0) target = $region9
  $region8: #{_lambda_.1} parent=0 // pred_region
    _
  $region9: #{_lambda_.1} parent=0 // pred_fallthru
    _
  // Predicated region
  $region10: #{_lambda_.1} parent=0 // pred_check
    _
  $region11: #{_lambda_.1} parent=0 // pred_check_branch
    %17 = sbr.rel (0) target = $region13
  $region12: #{_lambda_.1} parent=0 // pred_region
    _
  $region13: #{_lambda_.1} parent=0 // pred_fallthru
    _
  // Predicated region
  $region14: #{_lambda_.1} parent=0 // pred_check
    _
  $region15: #{_lambda_.1} parent=0 // pred_check_branch
    %19 = sbr.rel (0) target = $region17
  $region16: #{_lambda_.1} parent=0 // pred_region
    _
  $region17: #{_lambda_.1} parent=0 // pred_fallthru
    _
  // Predicated region
  $region18: #{_lambda_.1} parent=0 // pred_check
    _
  $region19: #{_lambda_.1} parent=0 // pred_check_branch
    %21 = sbr.rel (0) target = $region21
  $region20: #{_lambda_.1} parent=0 // pred_region
    _
  $region21: #{_lambda_.1} parent=0 // pred_fallthru
    _
  // Predicated region
  $region22: #{_lambda_.1} parent=0 // pred_check
    _
  $region23: #{_lambda_.1} parent=0 // pred_check_branch
    %23 = sbr.rel (0) target = $region25
  $region24: #{_lambda_.1} parent=0 // pred_region
    _
  $region25: #{_lambda_.1} parent=0 // pred_fallthru
    _
  // Predicated region
  $region26: #{_lambda_.1} parent=0 // pred_check
    _
  $region27: #{_lambda_.1} parent=0 // pred_check_branch
    %25 = sbr.rel (0) target = $region29
  $region28: #{_lambda_.1} parent=0 // pred_region
    _
  $region29: #{_lambda_.1} parent=0 // pred_fallthru
    _
  %v26 = vld [vmem:[%s0] sm:$0xff]
  %v27 = vld [vmem:[%s0 + $0x8] sm:$0xff]
  %v28 = vld [vmem:[%s0 + $0x10] sm:$0xff]
  %v29 = vld [vmem:[%s0 + $0x18] sm:$0xff]
  %v30 = vld [vmem:[%s0 + $0x20] sm:$0xff]
  %v31 = vld [vmem:[%s0 + $0x28] sm:$0xff]
  %v32 = vld [vmem:[%s0 + $0x30] sm:$0xff]
  %v33 = vld [vmem:[%s0 + $0x38] sm:$0xff]
  %v34 = vld [vmem:[%s0 + $0x40] sm:$0xff]
  %v35 = vld [vmem:[%s0 + $0x48] sm:$0xff]
  %v36 = vld [vmem:[%s0 + $0x50] sm:$0xff]
  %v37 = vld [vmem:[%s0 + $0x58] sm:$0xff]
  %v38 = vld [vmem:[%s0 + $0x60] sm:$0xff]
  %v39 = vld [vmem:[%s0 + $0x68] sm:$0xff]
  %v40 = vld [vmem:[%s0 + $0x70] sm:$0xff]
  %v41 = vld [vmem:[%s0 + $0x78] sm:$0xff]
  %v42 = vld [vmem:[%s1] sm:$0xff]
  %v43 = vld [vmem:[%s1 + $0x8] sm:$0xff]
  %v44 = vld [vmem:[%s1 + $0x10] sm:$0xff]
  %v45 = vld [vmem:[%s1 + $0x18] sm:$0xff]
  %v46 = vld [vmem:[%s1 + $0x20] sm:$0xff]
  %v47 = vld [vmem:[%s1 + $0x28] sm:$0xff]
  %v48 = vld [vmem:[%s1 + $0x30] sm:$0xff]
  %v49 = vld [vmem:[%s1 + $0x38] sm:$0xff]
  %v50 = vld [vmem:[%s1 + $0x40] sm:$0xff]
  %v51 = vld [vmem:[%s1 + $0x48] sm:$0xff]
  %v52 = vld [vmem:[%s1 + $0x50] sm:$0xff]
  %v53 = vld [vmem:[%s1 + $0x58] sm:$0xff]
  %v54 = vld [vmem:[%s1 + $0x60] sm:$0xff]
  %v55 = vld [vmem:[%s1 + $0x68] sm:$0xff]
  %v56 = vld [vmem:[%s1 + $0x70] sm:$0xff]
  %v57 = vld [vmem:[%s1 + $0x78] sm:$0xff]
  %v58 = vld [vmem:[%s4] sm:$0x1]
  %v60 = vperm.slane %v58, 0
  %62 = vmatpush.msra.mxu0 %v57
  %63 = vmatpush.msra.mxu0 %v56
  %64 = vmatpush.msra.mxu0 %v55
  %65 = vmatpush.msra.mxu0 %v54
  %66 = vmatpush.msra.mxu0 %v53
  %67 = vmatpush.msra.mxu0 %v52
  %68 = vmatpush.msra.mxu0 %v51
  %69 = vmatpush.msra.mxu0 %v50
  %70 = vmatpush.msra.mxu0 %v49
  %71 = vmatpush.msra.mxu0 %v48
  %72 = vmatpush.msra.mxu0 %v47
  %73 = vmatpush.msra.mxu0 %v46
  %74 = vmatpush.msra.mxu0 %v45
  %75 = vmatpush.msra.mxu0 %v44
  %76 = vmatpush.msra.mxu0 %v43
  %77 = vmatpush.msra.mxu0 %v42
  %78 = vmatmul.f32.gmra.mxu0 %v26
  %v79 = vpop.f32.mrf.mxu0
  %v80 = vadd.f32 %v60, %v79
  %81 = vmatmul.f32.gmra.mxu0 %v27
  %v82 = vpop.f32.mrf.mxu0
  %v83 = vadd.f32 %v60, %v82
  %84 = vmatmul.f32.gmra.mxu0 %v28
  %v85 = vpop.f32.mrf.mxu0
  %v86 = vadd.f32 %v60, %v85
  %87 = vmatmul.f32.gmra.mxu0 %v29
  %v88 = vpop.f32.mrf.mxu0
  %v89 = vadd.f32 %v60, %v88
  %90 = vmatmul.f32.gmra.mxu0 %v30
  %v91 = vpop.f32.mrf.mxu0
  %v92 = vadd.f32 %v60, %v91
  %93 = vmatmul.f32.gmra.mxu0 %v31
  %v94 = vpop.f32.mrf.mxu0
  %v95 = vadd.f32 %v60, %v94
  %96 = vmatmul.f32.gmra.mxu0 %v32
  %v97 = vpop.f32.mrf.mxu0
  %v98 = vadd.f32 %v60, %v97
  %99 = vmatmul.f32.gmra.mxu0 %v33
  %v100 = vpop.f32.mrf.mxu0
  %v101 = vadd.f32 %v60, %v100
  %102 = vmatmul.f32.gmra.mxu0 %v34
  %v103 = vpop.f32.mrf.mxu0
  %v104 = vadd.f32 %v60, %v103
  %105 = vmatmul.f32.gmra.mxu0 %v35
  %v106 = vpop.f32.mrf.mxu0
  %v107 = vadd.f32 %v60, %v106
  %108 = vmatmul.f32.gmra.mxu0 %v36
  %v109 = vpop.f32.mrf.mxu0
  %v110 = vadd.f32 %v60, %v109
  %111 = vmatmul.f32.gmra.mxu0 %v37
  %v112 = vpop.f32.mrf.mxu0
  %v113 = vadd.f32 %v60, %v112
  %114 = vmatmul.f32.gmra.mxu0 %v38
  %v115 = vpop.f32.mrf.mxu0
  %v116 = vadd.f32 %v60, %v115
  %117 = vmatmul.f32.gmra.mxu0 %v39
  %v118 = vpop.f32.mrf.mxu0
  %v119 = vadd.f32 %v60, %v118
  %120 = vmatmul.f32.gmra.mxu0 %v40
  %v121 = vpop.f32.mrf.mxu0
  %v122 = vadd.f32 %v60, %v121
  %123 = vmatmul.f32.gmra.mxu0 %v41
  %v124 = vpop.f32.mrf.mxu0
  %v125 = vadd.f32 %v60, %v124
  %126 = vdwg.mxu0
  %v127 = vmax.f32 %v80, 0.0
  %v128 = vmax.f32 %v83, 0.0
  %v129 = vmax.f32 %v86, 0.0
  %v130 = vmax.f32 %v89, 0.0
  %v131 = vmax.f32 %v92, 0.0
  %v132 = vmax.f32 %v95, 0.0
  %v133 = vmax.f32 %v98, 0.0
  %v134 = vmax.f32 %v101, 0.0
  %v135 = vmax.f32 %v104, 0.0
  %v136 = vmax.f32 %v107, 0.0
  %v137 = vmax.f32 %v110, 0.0
  %v138 = vmax.f32 %v113, 0.0
  %v139 = vmax.f32 %v116, 0.0
  %v140 = vmax.f32 %v119, 0.0
  %v141 = vmax.f32 %v122, 0.0
  %v142 = vmax.f32 %v125, 0.0
  %v143 = vld [vmem:[%s2] sm:$0xff]
  %v144 = vld [vmem:[%s2 + $0x8] sm:$0xff]
  %v145 = vld [vmem:[%s2 + $0x10] sm:$0xff]
  %v146 = vld [vmem:[%s2 + $0x18] sm:$0xff]
  %v147 = vld [vmem:[%s2 + $0x20] sm:$0xff]
  %v148 = vld [vmem:[%s2 + $0x28] sm:$0xff]
  %v149 = vld [vmem:[%s2 + $0x30] sm:$0xff]
  %v150 = vld [vmem:[%s2 + $0x38] sm:$0xff]
  %v151 = vld [vmem:[%s2 + $0x40] sm:$0xff]
  %v152 = vld [vmem:[%s2 + $0x48] sm:$0xff]
  %v153 = vld [vmem:[%s2 + $0x50] sm:$0xff]
  %v154 = vld [vmem:[%s2 + $0x58] sm:$0xff]
  %v155 = vld [vmem:[%s2 + $0x60] sm:$0xff]
  %v156 = vld [vmem:[%s2 + $0x68] sm:$0xff]
  %v157 = vld [vmem:[%s2 + $0x70] sm:$0xff]
  %v158 = vld [vmem:[%s2 + $0x78] sm:$0xff]
  %v159 = vld [vmem:[%s5] sm:$0x1]
  %v161 = vperm.slane %v159, 0
  %163 = vmatpush.msra.mxu0 %v158
  %164 = vmatpush.msra.mxu0 %v157
  %165 = vmatpush.msra.mxu0 %v156
  %166 = vmatpush.msra.mxu0 %v155
  %167 = vmatpush.msra.mxu0 %v154
  %168 = vmatpush.msra.mxu0 %v153
  %169 = vmatpush.msra.mxu0 %v152
  %170 = vmatpush.msra.mxu0 %v151
  %171 = vmatpush.msra.mxu0 %v150
  %172 = vmatpush.msra.mxu0 %v149
  %173 = vmatpush.msra.mxu0 %v148
  %174 = vmatpush.msra.mxu0 %v147
  %175 = vmatpush.msra.mxu0 %v146
  %176 = vmatpush.msra.mxu0 %v145
  %177 = vmatpush.msra.mxu0 %v144
  %178 = vmatpush.msra.mxu0 %v143
  %179 = vmatmul.f32.gmra.mxu0 %v127
  %v180 = vpop.f32.mrf.mxu0
  %v181 = vadd.f32 %v161, %v180
  %182 = vmatmul.f32.gmra.mxu0 %v128
  %v183 = vpop.f32.mrf.mxu0
  %v184 = vadd.f32 %v161, %v183
  %185 = vmatmul.f32.gmra.mxu0 %v129
  %v186 = vpop.f32.mrf.mxu0
  %v187 = vadd.f32 %v161, %v186
  %188 = vmatmul.f32.gmra.mxu0 %v130
  %v189 = vpop.f32.mrf.mxu0
  %v190 = vadd.f32 %v161, %v189
  %191 = vmatmul.f32.gmra.mxu0 %v131
  %v192 = vpop.f32.mrf.mxu0
  %v193 = vadd.f32 %v161, %v192
  %194 = vmatmul.f32.gmra.mxu0 %v132
  %v195 = vpop.f32.mrf.mxu0
  %v196 = vadd.f32 %v161, %v195
  %197 = vmatmul.f32.gmra.mxu0 %v133
  %v198 = vpop.f32.mrf.mxu0
  %v199 = vadd.f32 %v161, %v198
  %200 = vmatmul.f32.gmra.mxu0 %v134
  %v201 = vpop.f32.mrf.mxu0
  %v202 = vadd.f32 %v161, %v201
  %203 = vmatmul.f32.gmra.mxu0 %v135
  %v204 = vpop.f32.mrf.mxu0
  %v205 = vadd.f32 %v161, %v204
  %206 = vmatmul.f32.gmra.mxu0 %v136
  %v207 = vpop.f32.mrf.mxu0
  %v208 = vadd.f32 %v161, %v207
  %209 = vmatmul.f32.gmra.mxu0 %v137
  %v210 = vpop.f32.mrf.mxu0
  %v211 = vadd.f32 %v161, %v210
  %212 = vmatmul.f32.gmra.mxu0 %v138
  %v213 = vpop.f32.mrf.mxu0
  %v214 = vadd.f32 %v161, %v213
  %215 = vmatmul.f32.gmra.mxu0 %v139
  %v216 = vpop.f32.mrf.mxu0
  %v217 = vadd.f32 %v161, %v216
  %218 = vmatmul.f32.gmra.mxu0 %v140
  %v219 = vpop.f32.mrf.mxu0
  %v220 = vadd.f32 %v161, %v219
  %221 = vmatmul.f32.gmra.mxu0 %v141
  %v222 = vpop.f32.mrf.mxu0
  %v223 = vadd.f32 %v161, %v222
  %224 = vmatmul.f32.gmra.mxu0 %v142
  %v225 = vpop.f32.mrf.mxu0
  %v226 = vadd.f32 %v161, %v225
  %227 = vdwg.mxu0
  %v228 = vmax.f32 %v181, 0.0
  %v229 = vmax.f32 %v184, 0.0
  %v230 = vmax.f32 %v187, 0.0
  %v231 = vmax.f32 %v190, 0.0
  %v232 = vmax.f32 %v193, 0.0
  %v233 = vmax.f32 %v196, 0.0
  %v234 = vmax.f32 %v199, 0.0
  %v235 = vmax.f32 %v202, 0.0
  %v236 = vmax.f32 %v205, 0.0
  %v237 = vmax.f32 %v208, 0.0
  %v238 = vmax.f32 %v211, 0.0
  %v239 = vmax.f32 %v214, 0.0
  %v240 = vmax.f32 %v217, 0.0
  %v241 = vmax.f32 %v220, 0.0
  %v242 = vmax.f32 %v223, 0.0
  %v243 = vmax.f32 %v226, 0.0
  %v244 = vld [vmem:[%s3] sm:$0xff]
  %v245 = vld [vmem:[%s3 + $0x8] sm:$0xff]
  %v246 = vld [vmem:[%s3 + $0x10] sm:$0xff]
  %v247 = vld [vmem:[%s3 + $0x18] sm:$0xff]
  %v248 = vld [vmem:[%s3 + $0x20] sm:$0xff]
  %v249 = vld [vmem:[%s3 + $0x28] sm:$0xff]
  %v250 = vld [vmem:[%s3 + $0x30] sm:$0xff]
  %v251 = vld [vmem:[%s3 + $0x38] sm:$0xff]
  %v252 = vld [vmem:[%s3 + $0x40] sm:$0xff]
  %v253 = vld [vmem:[%s3 + $0x48] sm:$0xff]
  %v254 = vld [vmem:[%s3 + $0x50] sm:$0xff]
  %v255 = vld [vmem:[%s3 + $0x58] sm:$0xff]
  %v256 = vld [vmem:[%s3 + $0x60] sm:$0xff]
  %v257 = vld [vmem:[%s3 + $0x68] sm:$0xff]
  %v258 = vld [vmem:[%s3 + $0x70] sm:$0xff]
  %v259 = vld [vmem:[%s3 + $0x78] sm:$0xff]
  %v260 = vld [vmem:[%s6] sm:$0x1]
  %v262 = vperm.slane %v260, 0
  %264 = vmatpush.msra.mxu0 %v259
  %265 = vmatpush.msra.mxu0 %v258
  %266 = vmatpush.msra.mxu0 %v257
  %267 = vmatpush.msra.mxu0 %v256
  %268 = vmatpush.msra.mxu0 %v255
  %269 = vmatpush.msra.mxu0 %v254
  %270 = vmatpush.msra.mxu0 %v253
  %271 = vmatpush.msra.mxu0 %v252
  %272 = vmatpush.msra.mxu0 %v251
  %273 = vmatpush.msra.mxu0 %v250
  %274 = vmatpush.msra.mxu0 %v249
  %275 = vmatpush.msra.mxu0 %v248
  %276 = vmatpush.msra.mxu0 %v247
  %277 = vmatpush.msra.mxu0 %v246
  %278 = vmatpush.msra.mxu0 %v245
  %279 = vmatpush.msra.mxu0 %v244
  %280 = vmatmul.f32.gmra.mxu0 %v228
  %v281 = vpop.f32.mrf.mxu0
  %v282 = vadd.f32 %v262, %v281
  %283 = vmatmul.f32.gmra.mxu0 %v229
  %v284 = vpop.f32.mrf.mxu0
  %v285 = vadd.f32 %v262, %v284
  %286 = vmatmul.f32.gmra.mxu0 %v230
  %v287 = vpop.f32.mrf.mxu0
  %v288 = vadd.f32 %v262, %v287
  %289 = vmatmul.f32.gmra.mxu0 %v231
  %v290 = vpop.f32.mrf.mxu0
  %v291 = vadd.f32 %v262, %v290
  %292 = vmatmul.f32.gmra.mxu0 %v232
  %v293 = vpop.f32.mrf.mxu0
  %v294 = vadd.f32 %v262, %v293
  %295 = vmatmul.f32.gmra.mxu0 %v233
  %v296 = vpop.f32.mrf.mxu0
  %v297 = vadd.f32 %v262, %v296
  %298 = vmatmul.f32.gmra.mxu0 %v234
  %v299 = vpop.f32.mrf.mxu0
  %v300 = vadd.f32 %v262, %v299
  %301 = vmatmul.f32.gmra.mxu0 %v235
  %v302 = vpop.f32.mrf.mxu0
  %v303 = vadd.f32 %v262, %v302
  %304 = vmatmul.f32.gmra.mxu0 %v236
  %v305 = vpop.f32.mrf.mxu0
  %v306 = vadd.f32 %v262, %v305
  %307 = vmatmul.f32.gmra.mxu0 %v237
  %v308 = vpop.f32.mrf.mxu0
  %v309 = vadd.f32 %v262, %v308
  %310 = vmatmul.f32.gmra.mxu0 %v238
  %v311 = vpop.f32.mrf.mxu0
  %v312 = vadd.f32 %v262, %v311
  %313 = vmatmul.f32.gmra.mxu0 %v239
  %v314 = vpop.f32.mrf.mxu0
  %v315 = vadd.f32 %v262, %v314
  %316 = vmatmul.f32.gmra.mxu0 %v240
  %v317 = vpop.f32.mrf.mxu0
  %v318 = vadd.f32 %v262, %v317
  %319 = vmatmul.f32.gmra.mxu0 %v241
  %v320 = vpop.f32.mrf.mxu0
  %v321 = vadd.f32 %v262, %v320
  %322 = vmatmul.f32.gmra.mxu0 %v242
  %v323 = vpop.f32.mrf.mxu0
  %v324 = vadd.f32 %v262, %v323
  %325 = vmatmul.f32.gmra.mxu0 %v243
  %v326 = vpop.f32.mrf.mxu0
  %v327 = vadd.f32 %v262, %v326
  %328 = vdwg.mxu0
  %329 = vst [vmem:[%s7] sm:$0xff] %v282
  %330 = vst [vmem:[%s7 + $0x8] sm:$0xff] %v285
  %331 = vst [vmem:[%s7 + $0x10] sm:$0xff] %v288
  %332 = vst [vmem:[%s7 + $0x18] sm:$0xff] %v291
  %333 = vst [vmem:[%s7 + $0x20] sm:$0xff] %v294
  %334 = vst [vmem:[%s7 + $0x28] sm:$0xff] %v297
  %335 = vst [vmem:[%s7 + $0x30] sm:$0xff] %v300
  %336 = vst [vmem:[%s7 + $0x38] sm:$0xff] %v303
  %337 = vst [vmem:[%s7 + $0x40] sm:$0xff] %v306
  %338 = vst [vmem:[%s7 + $0x48] sm:$0xff] %v309
  %339 = vst [vmem:[%s7 + $0x50] sm:$0xff] %v312
  %340 = vst [vmem:[%s7 + $0x58] sm:$0xff] %v315
  %341 = vst [vmem:[%s7 + $0x60] sm:$0xff] %v318
  %342 = vst [vmem:[%s7 + $0x68] sm:$0xff] %v321
  %343 = vst [vmem:[%s7 + $0x70] sm:$0xff] %v324
  %344 = vst [vmem:[%s7 + $0x78] sm:$0xff] %v327
  // Predicated region
  $region30: #{_lambda_.1} parent=0 // pred_check
    _
  $region31: #{_lambda_.1} parent=0 // pred_check_branch
    %346 = sbr.rel (0) target = $region33
  $region32: #{_lambda_.1} parent=0 // pred_region
    _
  $region33: #{_lambda_.1} parent=0 // pred_fallthru
    _
  // Predicated region
  $region34: #{_lambda_.1} parent=0 // pred_check
    _
  $region35: #{_lambda_.1} parent=0 // pred_check_branch
    %348 = sbr.rel (0) target = $region37
  $region36: #{_lambda_.1} parent=0 // pred_region
    _
  $region37: #{_lambda_.1} parent=0 // pred_fallthru
    _

// kernel: _lambda_.1
$region0: #{_lambda_.1}
  #allocation0 [shape = 'u32[]', space=smem, size = 0x4, offset = 0x4, fixed_abs, tag = 'smem constant byte address 0x4 - core index']
  #allocation1 [shape = 'u32[72,128]{1,0:T(1,128)}', space=vmem, size = 0x9000, scoped, tag = 'internal scratch']
  %s0 = inlined_call_operand.vmem [shape: f32[128,128], index: 0, kind: input, shape index: {}]
  %s1 = inlined_call_operand.vmem [shape: f32[128,128], index: 1, kind: input, shape index: {}]
  %s2 = inlined_call_operand.vmem [shape: f32[128,128], index: 2, kind: input, shape index: {}]
  %s3 = inlined_call_operand.vmem [shape: f32[128,128], index: 3, kind: input, shape index: {}]
  %s4 = inlined_call_operand.vmem [shape: f32[1,128], index: 4, kind: input, shape index: {}]
  %s5 = inlined_call_operand.vmem [shape: f32[1,128], index: 5, kind: input, shape index: {}]
  %s6 = inlined_call_operand.vmem [shape: f32[1,128], index: 6, kind: input, shape index: {}]
  %s7 = inlined_call_operand.vmem [shape: f32[128,128], index: 7, kind: output, shape index: {}]
  %s8 = sld [smem:[#allocation0]]
  $region38: #{_lambda_.1} parent=0
    _
  %s10 = ssub.s32 1, %s8
  %s11 = scalar_select 0, %s10, %s8
  // Predicated region
  $region2: #{_lambda_.1} parent=0 // pred_check
    _
  $region3: #{_lambda_.1} parent=0 // pred_check_branch
    %13 = sbr.rel (0) target = $region5
  $region4: #{_lambda_.1} parent=0 // pred_region
    _
  $region5: #{_lambda_.1} parent=0 // pred_fallthru
    _
  // Predicated region
  $region6: #{_lambda_.1} parent=0 // pred_check
    _
  $region7: #{_lambda_.1} parent=0 // pred_check_branch
    %15 = sbr.rel (0) target = $region9
  $region8: #{_lambda_.1} parent=0 // pred_region
    _
  $region9: #{_lambda_.1} parent=0 // pred_fallthru
    _
  // Predicated region
  $region10: #{_lambda_.1} parent=0 // pred_check
    _
  $region11: #{_lambda_.1} parent=0 // pred_check_branch
    %17 = sbr.rel (0) target = $region13
  $region12: #{_lambda_.1} parent=0 // pred_region
    _
  $region13: #{_lambda_.1} parent=0 // pred_fallthru
    _
  // Predicated region
  $region14: #{_lambda_.1} parent=0 // pred_check
    _
  $region15: #{_lambda_.1} parent=0 // pred_check_branch
    %19 = sbr.rel (0) target = $region17
  $region16: #{_lambda_.1} parent=0 // pred_region
    _
  $region17: #{_lambda_.1} parent=0 // pred_fallthru
    _
  // Predicated region
  $region18: #{_lambda_.1} parent=0 // pred_check
    _
  $region19: #{_lambda_.1} parent=0 // pred_check_branch
    %21 = sbr.rel (0) target = $region21
  $region20: #{_lambda_.1} parent=0 // pred_region
    _
  $region21: #{_lambda_.1} parent=0 // pred_fallthru
    _
  // Predicated region
  $region22: #{_lambda_.1} parent=0 // pred_check
    _
  $region23: #{_lambda_.1} parent=0 // pred_check_branch
    %23 = sbr.rel (0) target = $region25
  $region24: #{_lambda_.1} parent=0 // pred_region
    _
  $region25: #{_lambda_.1} parent=0 // pred_fallthru
    _
  // Predicated region
  $region26: #{_lambda_.1} parent=0 // pred_check
    _
  $region27: #{_lambda_.1} parent=0 // pred_check_branch
    %25 = sbr.rel (0) target = $region29
  $region28: #{_lambda_.1} parent=0 // pred_region
    _
  $region29: #{_lambda_.1} parent=0 // pred_fallthru
    _
  %v26 = vld [vmem:[%s0] sm:$0xff]
  %v27 = vld [vmem:[%s0 + $0x8] sm:$0xff]
  %v28 = vld [vmem:[%s0 + $0x10] sm:$0xff]
  %v29 = vld [vmem:[%s0 + $0x18] sm:$0xff]
  %v30 = vld [vmem:[%s0 + $0x20] sm:$0xff]
  %v31 = vld [vmem:[%s0 + $0x28] sm:$0xff]
  %v32 = vld [vmem:[%s0 + $0x30] sm:$0xff]
  %v33 = vld [vmem:[%s0 + $0x38] sm:$0xff]
  %v34 = vld [vmem:[%s0 + $0x40] sm:$0xff]
  %v35 = vld [vmem:[%s0 + $0x48] sm:$0xff]
  %v36 = vld [vmem:[%s0 + $0x50] sm:$0xff]
  %v37 = vld [vmem:[%s0 + $0x58] sm:$0xff]
  %v38 = vld [vmem:[%s0 + $0x60] sm:$0xff]
  %v39 = vld [vmem:[%s0 + $0x68] sm:$0xff]
  %v40 = vld [vmem:[%s0 + $0x70] sm:$0xff]
  %v41 = vld [vmem:[%s0 + $0x78] sm:$0xff]
  %v42 = vld [vmem:[%s1] sm:$0xff]
  %v43 = vld [vmem:[%s1 + $0x8] sm:$0xff]
  %v44 = vld [vmem:[%s1 + $0x10] sm:$0xff]
  %v45 = vld [vmem:[%s1 + $0x18] sm:$0xff]
  %v46 = vld [vmem:[%s1 + $0x20] sm:$0xff]
  %v47 = vld [vmem:[%s1 + $0x28] sm:$0xff]
  %v48 = vld [vmem:[%s1 + $0x30] sm:$0xff]
  %v49 = vld [vmem:[%s1 + $0x38] sm:$0xff]
  %v50 = vld [vmem:[%s1 + $0x40] sm:$0xff]
  %v51 = vld [vmem:[%s1 + $0x48] sm:$0xff]
  %v52 = vld [vmem:[%s1 + $0x50] sm:$0xff]
  %v53 = vld [vmem:[%s1 + $0x58] sm:$0xff]
  %v54 = vld [vmem:[%s1 + $0x60] sm:$0xff]
  %v55 = vld [vmem:[%s1 + $0x68] sm:$0xff]
  %v56 = vld [vmem:[%s1 + $0x70] sm:$0xff]
  %v57 = vld [vmem:[%s1 + $0x78] sm:$0xff]
  %v58 = vld [vmem:[%s4] sm:$0x1]
  %v60 = vperm.slane %v58, 0
  %62 = vmatpush.msra.mxu0 %v57
  %63 = vmatpush.msra.mxu0 %v56
  %64 = vmatpush.msra.mxu0 %v55
  %65 = vmatpush.msra.mxu0 %v54
  %66 = vmatpush.msra.mxu0 %v53
  %67 = vmatpush.msra.mxu0 %v52
  %68 = vmatpush.msra.mxu0 %v51
  %69 = vmatpush.msra.mxu0 %v50
  %70 = vmatpush.msra.mxu0 %v49
  %71 = vmatpush.msra.mxu0 %v48
  %72 = vmatpush.msra.mxu0 %v47
  %73 = vmatpush.msra.mxu0 %v46
  %74 = vmatpush.msra.mxu0 %v45
  %75 = vmatpush.msra.mxu0 %v44
  %76 = vmatpush.msra.mxu0 %v43
  %77 = vmatpush.msra.mxu0 %v42
  %78 = vmatmul.f32.gmra.mxu0 %v26
  %v79 = vpop.f32.mrf.mxu0
  %v80 = vadd.f32 %v60, %v79
  %81 = vmatmul.f32.gmra.mxu0 %v27
  %v82 = vpop.f32.mrf.mxu0
  %v83 = vadd.f32 %v60, %v82
  %84 = vmatmul.f32.gmra.mxu0 %v28
  %v85 = vpop.f32.mrf.mxu0
  %v86 = vadd.f32 %v60, %v85
  %87 = vmatmul.f32.gmra.mxu0 %v29
  %v88 = vpop.f32.mrf.mxu0
  %v89 = vadd.f32 %v60, %v88
  %90 = vmatmul.f32.gmra.mxu0 %v30
  %v91 = vpop.f32.mrf.mxu0
  %v92 = vadd.f32 %v60, %v91
  %93 = vmatmul.f32.gmra.mxu0 %v31
  %v94 = vpop.f32.mrf.mxu0
  %v95 = vadd.f32 %v60, %v94
  %96 = vmatmul.f32.gmra.mxu0 %v32
  %v97 = vpop.f32.mrf.mxu0
  %v98 = vadd.f32 %v60, %v97
  %99 = vmatmul.f32.gmra.mxu0 %v33
  %v100 = vpop.f32.mrf.mxu0
  %v101 = vadd.f32 %v60, %v100
  %102 = vmatmul.f32.gmra.mxu0 %v34
  %v103 = vpop.f32.mrf.mxu0
  %v104 = vadd.f32 %v60, %v103
  %105 = vmatmul.f32.gmra.mxu0 %v35
  %v106 = vpop.f32.mrf.mxu0
  %v107 = vadd.f32 %v60, %v106
  %108 = vmatmul.f32.gmra.mxu0 %v36
  %v109 = vpop.f32.mrf.mxu0
  %v110 = vadd.f32 %v60, %v109
  %111 = vmatmul.f32.gmra.mxu0 %v37
  %v112 = vpop.f32.mrf.mxu0
  %v113 = vadd.f32 %v60, %v112
  %114 = vmatmul.f32.gmra.mxu0 %v38
  %v115 = vpop.f32.mrf.mxu0
  %v116 = vadd.f32 %v60, %v115
  %117 = vmatmul.f32.gmra.mxu0 %v39
  %v118 = vpop.f32.mrf.mxu0
  %v119 = vadd.f32 %v60, %v118
  %120 = vmatmul.f32.gmra.mxu0 %v40
  %v121 = vpop.f32.mrf.mxu0
  %v122 = vadd.f32 %v60, %v121
  %123 = vmatmul.f32.gmra.mxu0 %v41
  %v124 = vpop.f32.mrf.mxu0
  %v125 = vadd.f32 %v60, %v124
  %126 = vdwg.mxu0
  %v127 = vmax.f32 %v80, 0.0
  %v128 = vmax.f32 %v83, 0.0
  %v129 = vmax.f32 %v86, 0.0
  %v130 = vmax.f32 %v89, 0.0
  %v131 = vmax.f32 %v92, 0.0
  %v132 = vmax.f32 %v95, 0.0
  %v133 = vmax.f32 %v98, 0.0
  %v134 = vmax.f32 %v101, 0.0
  %v135 = vmax.f32 %v104, 0.0
  %v136 = vmax.f32 %v107, 0.0
  %v137 = vmax.f32 %v110, 0.0
  %v138 = vmax.f32 %v113, 0.0
  %v139 = vmax.f32 %v116, 0.0
  %v140 = vmax.f32 %v119, 0.0
  %v141 = vmax.f32 %v122, 0.0
  %v142 = vmax.f32 %v125, 0.0
  %v143 = vld [vmem:[%s2] sm:$0xff]
  %v144 = vld [vmem:[%s2 + $0x8] sm:$0xff]
  %v145 = vld [vmem:[%s2 + $0x10] sm:$0xff]
  %v146 = vld [vmem:[%s2 + $0x18] sm:$0xff]
  %v147 = vld [vmem:[%s2 + $0x20] sm:$0xff]
  %v148 = vld [vmem:[%s2 + $0x28] sm:$0xff]
  %v149 = vld [vmem:[%s2 + $0x30] sm:$0xff]
  %v150 = vld [vmem:[%s2 + $0x38] sm:$0xff]
  %v151 = vld [vmem:[%s2 + $0x40] sm:$0xff]
  %v152 = vld [vmem:[%s2 + $0x48] sm:$0xff]
  %v153 = vld [vmem:[%s2 + $0x50] sm:$0xff]
  %v154 = vld [vmem:[%s2 + $0x58] sm:$0xff]
  %v155 = vld [vmem:[%s2 + $0x60] sm:$0xff]
  %v156 = vld [vmem:[%s2 + $0x68] sm:$0xff]
  %v157 = vld [vmem:[%s2 + $0x70] sm:$0xff]
  %v158 = vld [vmem:[%s2 + $0x78] sm:$0xff]
  %v159 = vld [vmem:[%s5] sm:$0x1]
  %v161 = vperm.slane %v159, 0
  %163 = vmatpush.msra.mxu0 %v158
  %164 = vmatpush.msra.mxu0 %v157
  %165 = vmatpush.msra.mxu0 %v156
  %166 = vmatpush.msra.mxu0 %v155
  %167 = vmatpush.msra.mxu0 %v154
  %168 = vmatpush.msra.mxu0 %v153
  %169 = vmatpush.msra.mxu0 %v152
  %170 = vmatpush.msra.mxu0 %v151
  %171 = vmatpush.msra.mxu0 %v150
  %172 = vmatpush.msra.mxu0 %v149
  %173 = vmatpush.msra.mxu0 %v148
  %174 = vmatpush.msra.mxu0 %v147
  %175 = vmatpush.msra.mxu0 %v146
  %176 = vmatpush.msra.mxu0 %v145
  %177 = vmatpush.msra.mxu0 %v144
  %178 = vmatpush.msra.mxu0 %v143
  %179 = vmatmul.f32.gmra.mxu0 %v127
  %v180 = vpop.f32.mrf.mxu0
  %v181 = vadd.f32 %v161, %v180
  %182 = vmatmul.f32.gmra.mxu0 %v128
  %v183 = vpop.f32.mrf.mxu0
  %v184 = vadd.f32 %v161, %v183
  %185 = vmatmul.f32.gmra.mxu0 %v129
  %v186 = vpop.f32.mrf.mxu0
  %v187 = vadd.f32 %v161, %v186
  %188 = vmatmul.f32.gmra.mxu0 %v130
  %v189 = vpop.f32.mrf.mxu0
  %v190 = vadd.f32 %v161, %v189
  %191 = vmatmul.f32.gmra.mxu0 %v131
  %v192 = vpop.f32.mrf.mxu0
  %v193 = vadd.f32 %v161, %v192
  %194 = vmatmul.f32.gmra.mxu0 %v132
  %v195 = vpop.f32.mrf.mxu0
  %v196 = vadd.f32 %v161, %v195
  %197 = vmatmul.f32.gmra.mxu0 %v133
  %v198 = vpop.f32.mrf.mxu0
  %v199 = vadd.f32 %v161, %v198
  %200 = vmatmul.f32.gmra.mxu0 %v134
  %v201 = vpop.f32.mrf.mxu0
  %v202 = vadd.f32 %v161, %v201
  %203 = vmatmul.f32.gmra.mxu0 %v135
  %v204 = vpop.f32.mrf.mxu0
  %v205 = vadd.f32 %v161, %v204
  %206 = vmatmul.f32.gmra.mxu0 %v136
  %v207 = vpop.f32.mrf.mxu0
  %v208 = vadd.f32 %v161, %v207
  %209 = vmatmul.f32.gmra.mxu0 %v137
  %v210 = vpop.f32.mrf.mxu0
  %v211 = vadd.f32 %v161, %v210
  %212 = vmatmul.f32.gmra.mxu0 %v138
  %v213 = vpop.f32.mrf.mxu0
  %v214 = vadd.f32 %v161, %v213
  %215 = vmatmul.f32.gmra.mxu0 %v139
  %v216 = vpop.f32.mrf.mxu0
  %v217 = vadd.f32 %v161, %v216
  %218 = vmatmul.f32.gmra.mxu0 %v140
  %v219 = vpop.f32.mrf.mxu0
  %v220 = vadd.f32 %v161, %v219
  %221 = vmatmul.f32.gmra.mxu0 %v141
  %v222 = vpop.f32.mrf.mxu0
  %v223 = vadd.f32 %v161, %v222
  %224 = vmatmul.f32.gmra.mxu0 %v142
  %v225 = vpop.f32.mrf.mxu0
  %v226 = vadd.f32 %v161, %v225
  %227 = vdwg.mxu0
  %v228 = vmax.f32 %v181, 0.0
  %v229 = vmax.f32 %v184, 0.0
  %v230 = vmax.f32 %v187, 0.0
  %v231 = vmax.f32 %v190, 0.0
  %v232 = vmax.f32 %v193, 0.0
  %v233 = vmax.f32 %v196, 0.0
  %v234 = vmax.f32 %v199, 0.0
  %v235 = vmax.f32 %v202, 0.0
  %v236 = vmax.f32 %v205, 0.0
  %v237 = vmax.f32 %v208, 0.0
  %v238 = vmax.f32 %v211, 0.0
  %v239 = vmax.f32 %v214, 0.0
  %v240 = vmax.f32 %v217, 0.0
  %v241 = vmax.f32 %v220, 0.0
  %v242 = vmax.f32 %v223, 0.0
  %v243 = vmax.f32 %v226, 0.0
  %v244 = vld [vmem:[%s3] sm:$0xff]
  %v245 = vld [vmem:[%s3 + $0x8] sm:$0xff]
  %v246 = vld [vmem:[%s3 + $0x10] sm:$0xff]
  %v247 = vld [vmem:[%s3 + $0x18] sm:$0xff]
  %v248 = vld [vmem:[%s3 + $0x20] sm:$0xff]
  %v249 = vld [vmem:[%s3 + $0x28] sm:$0xff]
  %v250 = vld [vmem:[%s3 + $0x30] sm:$0xff]
  %v251 = vld [vmem:[%s3 + $0x38] sm:$0xff]
  %v252 = vld [vmem:[%s3 + $0x40] sm:$0xff]
  %v253 = vld [vmem:[%s3 + $0x48] sm:$0xff]
  %v254 = vld [vmem:[%s3 + $0x50] sm:$0xff]
  %v255 = vld [vmem:[%s3 + $0x58] sm:$0xff]
  %v256 = vld [vmem:[%s3 + $0x60] sm:$0xff]
  %v257 = vld [vmem:[%s3 + $0x68] sm:$0xff]
  %v258 = vld [vmem:[%s3 + $0x70] sm:$0xff]
  %v259 = vld [vmem:[%s3 + $0x78] sm:$0xff]
  %v260 = vld [vmem:[%s6] sm:$0x1]
  %v262 = vperm.slane %v260, 0
  %264 = vmatpush.msra.mxu0 %v259
  %265 = vmatpush.msra.mxu0 %v258
  %266 = vmatpush.msra.mxu0 %v257
  %267 = vmatpush.msra.mxu0 %v256
  %268 = vmatpush.msra.mxu0 %v255
  %269 = vmatpush.msra.mxu0 %v254
  %270 = vmatpush.msra.mxu0 %v253
  %271 = vmatpush.msra.mxu0 %v252
  %272 = vmatpush.msra.mxu0 %v251
  %273 = vmatpush.msra.mxu0 %v250
  %274 = vmatpush.msra.mxu0 %v249
  %275 = vmatpush.msra.mxu0 %v248
  %276 = vmatpush.msra.mxu0 %v247
  %277 = vmatpush.msra.mxu0 %v246
  %278 = vmatpush.msra.mxu0 %v245
  %279 = vmatpush.msra.mxu0 %v244
  %280 = vmatmul.f32.gmra.mxu0 %v228
  %v281 = vpop.f32.mrf.mxu0
  %v282 = vadd.f32 %v262, %v281
  %283 = vmatmul.f32.gmra.mxu0 %v229
  %v284 = vpop.f32.mrf.mxu0
  %v285 = vadd.f32 %v262, %v284
  %286 = vmatmul.f32.gmra.mxu0 %v230
  %v287 = vpop.f32.mrf.mxu0
  %v288 = vadd.f32 %v262, %v287
  %289 = vmatmul.f32.gmra.mxu0 %v231
  %v290 = vpop.f32.mrf.mxu0
  %v291 = vadd.f32 %v262, %v290
  %292 = vmatmul.f32.gmra.mxu0 %v232
  %v293 = vpop.f32.mrf.mxu0
  %v294 = vadd.f32 %v262, %v293
  %295 = vmatmul.f32.gmra.mxu0 %v233
  %v296 = vpop.f32.mrf.mxu0
  %v297 = vadd.f32 %v262, %v296
  %298 = vmatmul.f32.gmra.mxu0 %v234
  %v299 = vpop.f32.mrf.mxu0
  %v300 = vadd.f32 %v262, %v299
  %301 = vmatmul.f32.gmra.mxu0 %v235
  %v302 = vpop.f32.mrf.mxu0
  %v303 = vadd.f32 %v262, %v302
  %304 = vmatmul.f32.gmra.mxu0 %v236
  %v305 = vpop.f32.mrf.mxu0
  %v306 = vadd.f32 %v262, %v305
  %307 = vmatmul.f32.gmra.mxu0 %v237
  %v308 = vpop.f32.mrf.mxu0
  %v309 = vadd.f32 %v262, %v308
  %310 = vmatmul.f32.gmra.mxu0 %v238
  %v311 = vpop.f32.mrf.mxu0
  %v312 = vadd.f32 %v262, %v311
  %313 = vmatmul.f32.gmra.mxu0 %v239
  %v314 = vpop.f32.mrf.mxu0
  %v315 = vadd.f32 %v262, %v314
  %316 = vmatmul.f32.gmra.mxu0 %v240
  %v317 = vpop.f32.mrf.mxu0
  %v318 = vadd.f32 %v262, %v317
  %319 = vmatmul.f32.gmra.mxu0 %v241
  %v320 = vpop.f32.mrf.mxu0
  %v321 = vadd.f32 %v262, %v320
  %322 = vmatmul.f32.gmra.mxu0 %v242
  %v323 = vpop.f32.mrf.mxu0
  %v324 = vadd.f32 %v262, %v323
  %325 = vmatmul.f32.gmra.mxu0 %v243
  %v326 = vpop.f32.mrf.mxu0
  %v327 = vadd.f32 %v262, %v326
  %328 = vdwg.mxu0
  %329 = vst [vmem:[%s7] sm:$0xff] %v282
  %330 = vst [vmem:[%s7 + $0x8] sm:$0xff] %v285
  %331 = vst [vmem:[%s7 + $0x10] sm:$0xff] %v288
  %332 = vst [vmem:[%s7 + $0x18] sm:$0xff] %v291
  %333 = vst [vmem:[%s7 + $0x20] sm:$0xff] %v294
  %334 = vst [vmem:[%s7 + $0x28] sm:$0xff] %v297
  %335 = vst [vmem:[%s7 + $0x30] sm:$0xff] %v300
  %336 = vst [vmem:[%s7 + $0x38] sm:$0xff] %v303
  %337 = vst [vmem:[%s7 + $0x40] sm:$0xff] %v306
  %338 = vst [vmem:[%s7 + $0x48] sm:$0xff] %v309
  %339 = vst [vmem:[%s7 + $0x50] sm:$0xff] %v312
  %340 = vst [vmem:[%s7 + $0x58] sm:$0xff] %v315
  %341 = vst [vmem:[%s7 + $0x60] sm:$0xff] %v318
  %342 = vst [vmem:[%s7 + $0x68] sm:$0xff] %v321
  %343 = vst [vmem:[%s7 + $0x70] sm:$0xff] %v324
  %344 = vst [vmem:[%s7 + $0x78] sm:$0xff] %v327
  // Predicated region
  $region30: #{_lambda_.1} parent=0 // pred_check
    _
  $region31: #{_lambda_.1} parent=0 // pred_check_branch
    %346 = sbr.rel (0) target = $region33
  $region32: #{_lambda_.1} parent=0 // pred_region
    _
  $region33: #{_lambda_.1} parent=0 // pred_fallthru
    _
  // Predicated region
  $region34: #{_lambda_.1} parent=0 // pred_check
    _
  $region35: #{_lambda_.1} parent=0 // pred_check_branch
    %348 = sbr.rel (0) target = $region37
  $region36: #{_lambda_.1} parent=0 // pred_region
    _
  $region37: #{_lambda_.1} parent=0 // pred_fallthru
    _

</llo_original>
